<compile_context>
chip_gen: v6e
topology: v6e:2x2x1
jax: 0.10.0
libtpu: 0.0.40
codegen_flags: <defaults>
</compile_context>

<pallas_src>
import functools

import jax
import jax.numpy as jnp
from jax.experimental import pallas as pl
from jax.experimental.pallas import tpu as pltpu


def _pick_time_block(seq_len: int, target: int) -> int:
    """Largest time block <= target that divides seq_len and keeps the block's
    sublane dim either a multiple of 8 or the full sequence length."""
    if seq_len <= target:
        return seq_len
    for cand in range(target, 7, -1):
        if seq_len % cand == 0 and cand % 8 == 0:
            return cand
    return seq_len  # fallback: single time block (always layout-legal)


def _rnn_recurrence_kernel(xproj_ref, whh_ref, hs_ref, h_ref):
    """One grid step == one block of Tt RNN time steps.

    xproj_ref : (B, Tt, H)  precomputed x_t @ W_ih^T + (b_ih + b_hh), f32
    whh_ref   : (H, H)      hidden->hidden weight (transposed), resident
    hs_ref    : (B, Tt, H)  hidden states emitted for this time block
    h_ref     : (B, H)      VMEM scratch carrying the hidden state across blocks
    """
    @pl.when(pl.program_id(0) == 0)
    def _():
        h_ref[...] = jnp.zeros_like(h_ref)

    whh = whh_ref[...]                       # hoisted load, reused every step
    b, tt, hdim = xproj_ref.shape

    def step(i, h):
        x_t = xproj_ref[:, pl.ds(i, 1), :].reshape(b, hdim)
        h_new = jnp.tanh(
            x_t + jnp.dot(h, whh, preferred_element_type=jnp.float32))
        hs_ref[:, pl.ds(i, 1), :] = h_new.reshape(b, 1, hdim)
        return h_new

    h_ref[...] = jax.lax.fori_loop(0, tt, step, h_ref[...], unroll=True)


def lm_rnn_forward(tokens, params, *, time_block=32,
                   matmul_dtype=jnp.bfloat16):
    """tokens: (B, T) int32 -> logits (B, V, T) f32  (== PyTorch .permute(0,2,1)).

    matmul_dtype: operand dtype for the two hoisted (non-recurrent) projections.
    Accumulation is always f32 and all elementwise / recurrent math stays f32
    (use jnp.float32 on v5e or when bit-tight numerics are required).
    """
    emb_table = params["emb_table"]   # (V, E)   pad_index row zeroed
    w_ih_t = params["w_ih_t"]         # (E, H)
    w_hh_t = params["w_hh_t"]         # (H, H)
    b_rnn = params["b_rnn"]           # (H,)     b_ih + b_hh
    w_out = params["w_out"]           # (V, H)
    b_out = params["b_out"]           # (V,)

    B, T = tokens.shape
    V, E = emb_table.shape
    H = w_ih_t.shape[1]

    # --- glue: embedding gather, kept (B, T, E): no HBM transpose ------------
    emb = jnp.take(emb_table, tokens, axis=0)                       # (B, T, E)

    # --- hoisted input projection: one MXU-friendly matmul over B*T rows -----
    x_proj = jnp.einsum(
        "bte,eh->bth",
        emb.astype(matmul_dtype), w_ih_t.astype(matmul_dtype),
        preferred_element_type=jnp.float32) + b_rnn                 # (B, T, H) f32

    # --- Pallas: sequential recurrence only, time-blocked grid ---------------
    tt = _pick_time_block(T, time_block)
    grid = (T // tt,)

    hs = pl.pallas_call(
        _rnn_recurrence_kernel,
        out_shape=jax.ShapeDtypeStruct((B, T, H), jnp.float32),
        grid=grid,                          # plain grid (no scalar prefetch)
        in_specs=[
            pl.BlockSpec((B, tt, H), lambda t: (0, t, 0)),   # x_proj time block
            pl.BlockSpec((H, H), lambda t: (0, 0)),          # W_hh (constant idx)
        ],
        out_specs=pl.BlockSpec((B, tt, H), lambda t: (0, t, 0)),
        scratch_shapes=[pltpu.VMEM((B, H), jnp.float32)],
        compiler_params=pltpu.CompilerParams(
            # recurrence across time blocks -> must run in order
            dimension_semantics=("arbitrary",),
        ),
        cost_estimate=pl.CostEstimate(
            flops=2 * B * T * H * H,
            transcendentals=B * T * H,
            bytes_accessed=4 * (2 * B * T * H + H * H),
        ),
    )(x_proj, w_hh_t)                                               # (B, T, H)

    # --- hoisted output projection: emits (B, V, T) directly (fused permute) -
    logits = jnp.einsum(
        "bth,vh->bvt",
        hs.astype(matmul_dtype), w_out.astype(matmul_dtype),
        preferred_element_type=jnp.float32) + b_out[None, :, None]  # (B, V, T)
    return logits


def init_params(key, emb_size, hidden_size, output_size, pad_index=0):
    kE, k1, k2, k3, k4, k5, k6 = jax.random.split(key, 7)
    V, E, H = output_size, emb_size, hidden_size

    emb_table = jax.random.normal(kE, (V, E), jnp.float32)
    emb_table = emb_table.at[pad_index].set(0.0)      # padding_idx row is zero

    s = 1.0 / jnp.sqrt(H)                             # PyTorch nn.RNN init
    w_ih = jax.random.uniform(k1, (H, E), jnp.float32, -s, s)
    w_hh = jax.random.uniform(k2, (H, H), jnp.float32, -s, s)
    b_ih = jax.random.uniform(k3, (H,), jnp.float32, -s, s)
    b_hh = jax.random.uniform(k4, (H,), jnp.float32, -s, s)

    w_out = jax.random.uniform(k5, (V, H), jnp.float32, -s, s)   # nn.Linear init
    b_out = jax.random.uniform(k6, (V,), jnp.float32, -s, s)

    return {
        "emb_table": emb_table,
        "w_ih_t": w_ih.T,            # (E, H)
        "w_hh_t": w_hh.T,            # (H, H)
        "b_rnn": b_ih + b_hh,        # (H,)
        "w_out": w_out,              # (V, H)
        "b_out": b_out,              # (V,)
    }


def lm_rnn_reference(tokens, params):
    """Pure-JAX f32 reference of the same forward pass."""
    emb = jnp.take(params["emb_table"], tokens, axis=0)            # (B, T, E)
    x_proj = emb @ params["w_ih_t"] + params["b_rnn"]              # (B, T, H)

    def step(h, x_t):
        h_new = jnp.tanh(x_t + h @ params["w_hh_t"])
        return h_new, h_new

    B = tokens.shape[0]
    H = params["w_hh_t"].shape[0]
    h0 = jnp.zeros((B, H), jnp.float32)
    _, hs = jax.lax.scan(step, h0, jnp.transpose(x_proj, (1, 0, 2)))  # (T, B, H)
    logits = (jnp.einsum("tbh,vh->bvt", hs, params["w_out"])
              + params["b_out"][None, :, None])                    # (B, V, T)
    return logits


if __name__ == "__main__":
    # Small shapes consistent with the module's forward.
    B, T = 2, 8
    emb_size, hidden_size, output_size = 32, 32, 16
    pad_index = 0

    key = jax.random.PRNGKey(0)
    kp, kt = jax.random.split(key)
    params = init_params(kp, emb_size, hidden_size, output_size, pad_index)
    tokens = jax.random.randint(kt, (B, T), 0, output_size, dtype=jnp.int32)

    ref = jax.block_until_ready(lm_rnn_reference(tokens, params))

    # f32 projections: tight check against the pure-JAX reference.
    fwd_f32 = jax.jit(functools.partial(lm_rnn_forward,
                                        matmul_dtype=jnp.float32))
    out = jax.block_until_ready(fwd_f32(tokens, params))
    assert out.shape == (B, output_size, T), out.shape
    assert jnp.allclose(out, ref, atol=1e-4, rtol=1e-4)

    # Default path (bf16 hoisted projections, f32 recurrence/elementwise):
    # looser tolerance due to bf16 operand rounding.
    fwd = jax.jit(lm_rnn_forward)
    out_bf16 = jax.block_until_ready(fwd(tokens, params))
    assert out_bf16.shape == (B, output_size, T), out_bf16.shape
    assert bool(jnp.isfinite(out_bf16).all())
    assert jnp.allclose(out_bf16, ref, atol=1e-1, rtol=1e-1)

    print("KERNEL_OK")
</pallas_src>

<mosaic_0001>
module attributes {stable_mosaic.version = 11 : i64} {
  func.func @_rnn_recurrence_kernel(%arg0: i32, %arg1: memref<2x8x32xf32, #tpu.memory_space<vmem>>, %arg2: memref<32x32xf32, #tpu.memory_space<vmem>>, %arg3: memref<2x8x32xf32, #tpu.memory_space<vmem>>, %arg4: memref<2x32xf32, #tpu.memory_space<vmem>>) attributes {dimension_semantics = [#tpu.dimension_semantics<arbitrary>], iteration_bounds = array<i64: 1>, scalar_prefetch = 0 : i64, scratch_operands = 1 : i64, tpu.core_type = #tpu.core_type<tc>, window_params = [{transform_indices = @transform_0, window_bounds = array<i64: 2, 8, 32>}, {pipeline_mode = #tpu.pipeline_mode<synchronous>, transform_indices = @transform_1, window_bounds = array<i64: 32, 32>}, {transform_indices = @transform_2, window_bounds = array<i64: 2, 8, 32>}]} {
    %c0_i32 = arith.constant 0 : i32
    %0 = arith.cmpi eq, %arg0, %c0_i32 : i32
    %1 = arith.extui %0 : i1 to i32
    %c0_i32_0 = arith.constant 0 : i32
    %2 = arith.cmpi ne, %1, %c0_i32_0 : i32
    scf.if %2 {
      %cst_46 = arith.constant 0.000000e+00 : f32
      %78 = vector.broadcast %cst_46 : f32 to vector<2x32xf32>
      %c0_47 = arith.constant 0 : index
      %c0_48 = arith.constant 0 : index
      %79 = vector.load %arg4[%c0_47, %c0_48] : memref<2x32xf32, #tpu.memory_space<vmem>>, vector<2x32xf32>
      tpu.vector_store %arg4[%c0_47, %c0_48], %78 {strides = array<i32>} : memref<2x32xf32, #tpu.memory_space<vmem>>, vector<2x32xf32>,
    } else {
    }
    %c0 = arith.constant 0 : index
    %c0_1 = arith.constant 0 : index
    %3 = vector.load %arg2[%c0, %c0_1] : memref<32x32xf32, #tpu.memory_space<vmem>>, vector<32x32xf32>
    %c0_2 = arith.constant 0 : index
    %c0_3 = arith.constant 0 : index
    %4 = vector.load %arg4[%c0_2, %c0_3] : memref<2x32xf32, #tpu.memory_space<vmem>>, vector<2x32xf32>
    %c0_i32_4 = arith.constant 0 : i32
    %c0_5 = arith.constant 0 : index
    %5 = arith.index_cast %c0_i32_4 : i32 to index
    %c0_6 = arith.constant 0 : index
    %6 = vector.load %arg1[%c0_5, %5, %c0_6] : memref<2x8x32xf32, #tpu.memory_space<vmem>>, vector<2x1x32xf32>
    %7 = vector.shape_cast %6 : vector<2x1x32xf32> to vector<2x32xf32>
    %cst = arith.constant dense<0.000000e+00> : vector<2x32xf32>
    %8 = tpu.matmul %4, %3, %cst {dimension_numbers = #tpu.dot_dimension_numbers<[1], [0], [0], [1], [0, 0, 1, 1], [], []>} : vector<2x32xf32>, vector<32x32xf32>, vector<2x32xf32> -> vector<2x32xf32>
    %9 = arith.addf %7, %8 : vector<2x32xf32>
    %10 = math.tanh %9 : vector<2x32xf32>
    %11 = vector.shape_cast %10 : vector<2x32xf32> to vector<2x1x32xf32>
    %c0_7 = arith.constant 0 : index
    %12 = arith.index_cast %c0_i32_4 : i32 to index
    %c0_8 = arith.constant 0 : index
    %13 = vector.load %arg3[%c0_7, %12, %c0_8] : memref<2x8x32xf32, #tpu.memory_space<vmem>>, vector<2x1x32xf32>
    tpu.vector_store %arg3[%c0_7, %12, %c0_8], %11 {strides = array<i32>} : memref<2x8x32xf32, #tpu.memory_space<vmem>>, vector<2x1x32xf32>,
    %c1_i32 = arith.constant 1 : i32
    %c0_9 = arith.constant 0 : index
    %14 = arith.index_cast %c1_i32 : i32 to index
    %c0_10 = arith.constant 0 : index
    %15 = vector.load %arg1[%c0_9, %14, %c0_10] : memref<2x8x32xf32, #tpu.memory_space<vmem>>, vector<2x1x32xf32>
    %16 = vector.shape_cast %15 : vector<2x1x32xf32> to vector<2x32xf32>
    %cst_11 = arith.constant dense<0.000000e+00> : vector<2x32xf32>
    %17 = tpu.matmul %10, %3, %cst_11 {dimension_numbers = #tpu.dot_dimension_numbers<[1], [0], [0], [1], [0, 0, 1, 1], [], []>} : vector<2x32xf32>, vector<32x32xf32>, vector<2x32xf32> -> vector<2x32xf32>
    %18 = arith.addf %16, %17 : vector<2x32xf32>
    %19 = math.tanh %18 : vector<2x32xf32>
    %20 = vector.shape_cast %19 : vector<2x32xf32> to vector<2x1x32xf32>
    %c0_12 = arith.constant 0 : index
    %21 = arith.index_cast %c1_i32 : i32 to index
    %c0_13 = arith.constant 0 : index
    %22 = vector.load %arg3[%c0_12, %21, %c0_13] : memref<2x8x32xf32, #tpu.memory_space<vmem>>, vector<2x1x32xf32>
    tpu.vector_store %arg3[%c0_12, %21, %c0_13], %20 {strides = array<i32>} : memref<2x8x32xf32, #tpu.memory_space<vmem>>, vector<2x1x32xf32>,
    %c2_i32 = arith.constant 2 : i32
    %c0_14 = arith.constant 0 : index
    %23 = arith.index_cast %c2_i32 : i32 to index
    %c0_15 = arith.constant 0 : index
    %24 = vector.load %arg1[%c0_14, %23, %c0_15] : memref<2x8x32xf32, #tpu.memory_space<vmem>>, vector<2x1x32xf32>
    %25 = vector.shape_cast %24 : vector<2x1x32xf32> to vector<2x32xf32>
    %cst_16 = arith.constant dense<0.000000e+00> : vector<2x32xf32>
    %26 = tpu.matmul %19, %3, %cst_16 {dimension_numbers = #tpu.dot_dimension_numbers<[1], [0], [0], [1], [0, 0, 1, 1], [], []>} : vector<2x32xf32>, vector<32x32xf32>, vector<2x32xf32> -> vector<2x32xf32>
    %27 = arith.addf %25, %26 : vector<2x32xf32>
    %28 = math.tanh %27 : vector<2x32xf32>
    %29 = vector.shape_cast %28 : vector<2x32xf32> to vector<2x1x32xf32>
    %c0_17 = arith.constant 0 : index
    %30 = arith.index_cast %c2_i32 : i32 to index
    %c0_18 = arith.constant 0 : index
    %31 = vector.load %arg3[%c0_17, %30, %c0_18] : memref<2x8x32xf32, #tpu.memory_space<vmem>>, vector<2x1x32xf32>
    tpu.vector_store %arg3[%c0_17, %30, %c0_18], %29 {strides = array<i32>} : memref<2x8x32xf32, #tpu.memory_space<vmem>>, vector<2x1x32xf32>,
    %c3_i32 = arith.constant 3 : i32
    %c0_19 = arith.constant 0 : index
    %32 = arith.index_cast %c3_i32 : i32 to index
    %c0_20 = arith.constant 0 : index
    %33 = vector.load %arg1[%c0_19, %32, %c0_20] : memref<2x8x32xf32, #tpu.memory_space<vmem>>, vector<2x1x32xf32>
    %34 = vector.shape_cast %33 : vector<2x1x32xf32> to vector<2x32xf32>
    %cst_21 = arith.constant dense<0.000000e+00> : vector<2x32xf32>
    %35 = tpu.matmul %28, %3, %cst_21 {dimension_numbers = #tpu.dot_dimension_numbers<[1], [0], [0], [1], [0, 0, 1, 1], [], []>} : vector<2x32xf32>, vector<32x32xf32>, vector<2x32xf32> -> vector<2x32xf32>
    %36 = arith.addf %34, %35 : vector<2x32xf32>
    %37 = math.tanh %36 : vector<2x32xf32>
    %38 = vector.shape_cast %37 : vector<2x32xf32> to vector<2x1x32xf32>
    %c0_22 = arith.constant 0 : index
    %39 = arith.index_cast %c3_i32 : i32 to index
    %c0_23 = arith.constant 0 : index
    %40 = vector.load %arg3[%c0_22, %39, %c0_23] : memref<2x8x32xf32, #tpu.memory_space<vmem>>, vector<2x1x32xf32>
    tpu.vector_store %arg3[%c0_22, %39, %c0_23], %38 {strides = array<i32>} : memref<2x8x32xf32, #tpu.memory_space<vmem>>, vector<2x1x32xf32>,
    %c4_i32 = arith.constant 4 : i32
    %c0_24 = arith.constant 0 : index
    %41 = arith.index_cast %c4_i32 : i32 to index
    %c0_25 = arith.constant 0 : index
    %42 = vector.load %arg1[%c0_24, %41, %c0_25] : memref<2x8x32xf32, #tpu.memory_space<vmem>>, vector<2x1x32xf32>
    %43 = vector.shape_cast %42 : vector<2x1x32xf32> to vector<2x32xf32>
    %cst_26 = arith.constant dense<0.000000e+00> : vector<2x32xf32>
    %44 = tpu.matmul %37, %3, %cst_26 {dimension_numbers = #tpu.dot_dimension_numbers<[1], [0], [0], [1], [0, 0, 1, 1], [], []>} : vector<2x32xf32>, vector<32x32xf32>, vector<2x32xf32> -> vector<2x32xf32>
    %45 = arith.addf %43, %44 : vector<2x32xf32>
    %46 = math.tanh %45 : vector<2x32xf32>
    %47 = vector.shape_cast %46 : vector<2x32xf32> to vector<2x1x32xf32>
    %c0_27 = arith.constant 0 : index
    %48 = arith.index_cast %c4_i32 : i32 to index
    %c0_28 = arith.constant 0 : index
    %49 = vector.load %arg3[%c0_27, %48, %c0_28] : memref<2x8x32xf32, #tpu.memory_space<vmem>>, vector<2x1x32xf32>
    tpu.vector_store %arg3[%c0_27, %48, %c0_28], %47 {strides = array<i32>} : memref<2x8x32xf32, #tpu.memory_space<vmem>>, vector<2x1x32xf32>,
    %c5_i32 = arith.constant 5 : i32
    %c0_29 = arith.constant 0 : index
    %50 = arith.index_cast %c5_i32 : i32 to index
    %c0_30 = arith.constant 0 : index
    %51 = vector.load %arg1[%c0_29, %50, %c0_30] : memref<2x8x32xf32, #tpu.memory_space<vmem>>, vector<2x1x32xf32>
    %52 = vector.shape_cast %51 : vector<2x1x32xf32> to vector<2x32xf32>
    %cst_31 = arith.constant dense<0.000000e+00> : vector<2x32xf32>
    %53 = tpu.matmul %46, %3, %cst_31 {dimension_numbers = #tpu.dot_dimension_numbers<[1], [0], [0], [1], [0, 0, 1, 1], [], []>} : vector<2x32xf32>, vector<32x32xf32>, vector<2x32xf32> -> vector<2x32xf32>
    %54 = arith.addf %52, %53 : vector<2x32xf32>
    %55 = math.tanh %54 : vector<2x32xf32>
    %56 = vector.shape_cast %55 : vector<2x32xf32> to vector<2x1x32xf32>
    %c0_32 = arith.constant 0 : index
    %57 = arith.index_cast %c5_i32 : i32 to index
    %c0_33 = arith.constant 0 : index
    %58 = vector.load %arg3[%c0_32, %57, %c0_33] : memref<2x8x32xf32, #tpu.memory_space<vmem>>, vector<2x1x32xf32>
    tpu.vector_store %arg3[%c0_32, %57, %c0_33], %56 {strides = array<i32>} : memref<2x8x32xf32, #tpu.memory_space<vmem>>, vector<2x1x32xf32>,
    %c6_i32 = arith.constant 6 : i32
    %c0_34 = arith.constant 0 : index
    %59 = arith.index_cast %c6_i32 : i32 to index
    %c0_35 = arith.constant 0 : index
    %60 = vector.load %arg1[%c0_34, %59, %c0_35] : memref<2x8x32xf32, #tpu.memory_space<vmem>>, vector<2x1x32xf32>
    %61 = vector.shape_cast %60 : vector<2x1x32xf32> to vector<2x32xf32>
    %cst_36 = arith.constant dense<0.000000e+00> : vector<2x32xf32>
    %62 = tpu.matmul %55, %3, %cst_36 {dimension_numbers = #tpu.dot_dimension_numbers<[1], [0], [0], [1], [0, 0, 1, 1], [], []>} : vector<2x32xf32>, vector<32x32xf32>, vector<2x32xf32> -> vector<2x32xf32>
    %63 = arith.addf %61, %62 : vector<2x32xf32>
    %64 = math.tanh %63 : vector<2x32xf32>
    %65 = vector.shape_cast %64 : vector<2x32xf32> to vector<2x1x32xf32>
    %c0_37 = arith.constant 0 : index
    %66 = arith.index_cast %c6_i32 : i32 to index
    %c0_38 = arith.constant 0 : index
    %67 = vector.load %arg3[%c0_37, %66, %c0_38] : memref<2x8x32xf32, #tpu.memory_space<vmem>>, vector<2x1x32xf32>
    tpu.vector_store %arg3[%c0_37, %66, %c0_38], %65 {strides = array<i32>} : memref<2x8x32xf32, #tpu.memory_space<vmem>>, vector<2x1x32xf32>,
    %c7_i32 = arith.constant 7 : i32
    %c0_39 = arith.constant 0 : index
    %68 = arith.index_cast %c7_i32 : i32 to index
    %c0_40 = arith.constant 0 : index
    %69 = vector.load %arg1[%c0_39, %68, %c0_40] : memref<2x8x32xf32, #tpu.memory_space<vmem>>, vector<2x1x32xf32>
    %70 = vector.shape_cast %69 : vector<2x1x32xf32> to vector<2x32xf32>
    %cst_41 = arith.constant dense<0.000000e+00> : vector<2x32xf32>
    %71 = tpu.matmul %64, %3, %cst_41 {dimension_numbers = #tpu.dot_dimension_numbers<[1], [0], [0], [1], [0, 0, 1, 1], [], []>} : vector<2x32xf32>, vector<32x32xf32>, vector<2x32xf32> -> vector<2x32xf32>
    %72 = arith.addf %70, %71 : vector<2x32xf32>
    %73 = math.tanh %72 : vector<2x32xf32>
    %74 = vector.shape_cast %73 : vector<2x32xf32> to vector<2x1x32xf32>
    %c0_42 = arith.constant 0 : index
    %75 = arith.index_cast %c7_i32 : i32 to index
    %c0_43 = arith.constant 0 : index
    %76 = vector.load %arg3[%c0_42, %75, %c0_43] : memref<2x8x32xf32, #tpu.memory_space<vmem>>, vector<2x1x32xf32>
    tpu.vector_store %arg3[%c0_42, %75, %c0_43], %74 {strides = array<i32>} : memref<2x8x32xf32, #tpu.memory_space<vmem>>, vector<2x1x32xf32>,
    %c8_i32 = arith.constant 8 : i32
    %c0_44 = arith.constant 0 : index
    %c0_45 = arith.constant 0 : index
    %77 = vector.load %arg4[%c0_44, %c0_45] : memref<2x32xf32, #tpu.memory_space<vmem>>, vector<2x32xf32>
    tpu.vector_store %arg4[%c0_44, %c0_45], %73 {strides = array<i32>} : memref<2x32xf32, #tpu.memory_space<vmem>>, vector<2x32xf32>,
    return
  }
  func.func @transform_0(%arg0: i32) -> (i32, i32, i32) {
    %c0_i32 = arith.constant 0 : i32
    %c0_i32_0 = arith.constant 0 : i32
    %c0_i32_1 = arith.constant 0 : i32
    return %c0_i32, %arg0, %c0_i32_0 : i32, i32, i32
  }
  func.func @transform_1(%arg0: i32) -> (i32, i32) {
    %c0_i32 = arith.constant 0 : i32
    %c0_i32_0 = arith.constant 0 : i32
    %c0_i32_1 = arith.constant 0 : i32
    return %c0_i32, %c0_i32_0 : i32, i32
  }
  func.func @transform_2(%arg0: i32) -> (i32, i32, i32) {
    %c0_i32 = arith.constant 0 : i32
    %c0_i32_0 = arith.constant 0 : i32
    %c0_i32_1 = arith.constant 0 : i32
    return %c0_i32, %arg0, %c0_i32_0 : i32, i32, i32
  }
}

</mosaic_0001>

<llo_original>
// kernel: lm_rnn_forward.1
$region0: #{lm_rnn_forward.1}
  #allocation0 [shape = 'u32[]', space=smem, size = 0x4, offset = 0x4, fixed_abs, tag = 'smem constant byte address 0x4 - core index']
  #allocation1 [shape = 'u32[144,128]{1,0:T(1,128)}', space=vmem, size = 0x12000, scoped, tag = 'internal scratch']
  #allocation2 [shape = 'f32[2,32]{1,0:T(2,128)}', space=vmem, size = 0x400, scoped, tag = 'scratch operand']
  %s0 = inlined_call_operand.vmem [shape: f32[2,8,32], index: 0, kind: input, shape index: {}]
  %s1 = inlined_call_operand.vmem [shape: f32[32,32], index: 1, kind: input, shape index: {}]
  %s2 = inlined_call_operand.vmem [shape: f32[2,8,32], index: 2, kind: output, shape index: {}]
  %s3 = sld [smem:[#allocation0]]
  $region22: #{lm_rnn_forward.1} parent=0
    _
  %s5 = ssub.s32 1, %s3
  %s6 = scalar_select 0, %s5, %s3
  // Predicated region
  $region2: #{lm_rnn_forward.1} parent=0 // pred_check
    _
  $region3: #{lm_rnn_forward.1} parent=0 // pred_check_branch
    %8 = sbr.rel (0) target = $region5
  $region4: #{lm_rnn_forward.1} parent=0 // pred_region
    _
  $region5: #{lm_rnn_forward.1} parent=0 // pred_fallthru
    _
  // Predicated region
  $region6: #{lm_rnn_forward.1} parent=0 // pred_check
    _
  $region7: #{lm_rnn_forward.1} parent=0 // pred_check_branch
    %10 = sbr.rel (0) target = $region9
  $region8: #{lm_rnn_forward.1} parent=0 // pred_region
    _
  $region9: #{lm_rnn_forward.1} parent=0 // pred_fallthru
    _
  %p11 = scmp.eq.s32.totalorder 0, 0
  // Predicated region
  $region10: #{lm_rnn_forward.1} parent=0 // pred_check
    %p12 = pneg %p11
  $region11: #{lm_rnn_forward.1} parent=0 // pred_check_branch
    %14 = sbr.rel (%p12) target = $region13
  $region12: #{lm_rnn_forward.1} parent=0 // pred_region
    %vm15 = vcmask 254976
    %16 = vst.msk [vmem:[#allocation2] sm:$0x3] %vm15, 0.0
  $region13: #{lm_rnn_forward.1} parent=0 // pred_fallthru
    _
  %v17 = vld [vmem:[%s1] sm:$0xff]
  %v18 = vld [vmem:[%s1 + $0x8] sm:$0xff]
  %v19 = vld [vmem:[%s1 + $0x10] sm:$0xff]
  %v20 = vld [vmem:[%s1 + $0x18] sm:$0xff]
  %v21 = vld [vmem:[#allocation2] sm:$0x3]
  %v22 = vld [vmem:[%s0] sm:$0x1]
  %v23 = vld [vmem:[%s0 + $0x8] sm:$0x1]
  %vm24 = vcmask 261120
  %v26 = vsel %vm24, %v21, 0
  %28 = vmatprep.subr.mxu0 0.0
  %29 = vmatpush1.msra.mxu0 0.0
  %30 = vmatprep.subr.mxu0 0.0
  %31 = vmatpush1.msra.mxu0 0.0
  %32 = vmatprep.subr.mxu0 0.0
  %33 = vmatpush1.msra.mxu0 0.0
  %34 = vmatprep.subr.mxu0 0.0
  %35 = vmatpush1.msra.mxu0 0.0
  %36 = vmatprep.subr.mxu0 0.0
  %37 = vmatpush1.msra.mxu0 0.0
  %38 = vmatprep.subr.mxu0 0.0
  %39 = vmatpush1.msra.mxu0 0.0
  %40 = vmatprep.subr.mxu0 0.0
  %41 = vmatpush1.msra.mxu0 0.0
  %42 = vmatprep.subr.mxu0 0.0
  %43 = vmatpush1.msra.mxu0 0.0
  %44 = vmatprep.subr.mxu0 0.0
  %45 = vmatpush1.msra.mxu0 0.0
  %46 = vmatprep.subr.mxu0 0.0
  %47 = vmatpush1.msra.mxu0 0.0
  %48 = vmatprep.subr.mxu0 0.0
  %49 = vmatpush1.msra.mxu0 0.0
  %50 = vmatprep.subr.mxu0 0.0
  %51 = vmatpush1.msra.mxu0 0.0
  %52 = vmatprep.subr.mxu0 0.0
  %53 = vmatpush1.msra.mxu0 %v20
  %54 = vmatprep.subr.mxu0 0.0
  %55 = vmatpush1.msra.mxu0 %v19
  %56 = vmatprep.subr.mxu0 0.0
  %57 = vmatpush1.msra.mxu0 %v18
  %58 = vmatprep.subr.mxu0 0.0
  %59 = vmatpush1.msra.mxu0 %v17
  %60 = vmatprep.subr.mxu0 0.0
  %61 = vmatpush2.msra.mxu0 0.0
  %62 = vmatprep.subr.mxu0 0.0
  %63 = vmatpush2.msra.mxu0 0.0
  %64 = vmatprep.subr.mxu0 0.0
  %65 = vmatpush2.msra.mxu0 0.0
  %66 = vmatprep.subr.mxu0 0.0
  %67 = vmatpush2.msra.mxu0 0.0
  %68 = vmatprep.subr.mxu0 0.0
  %69 = vmatpush2.msra.mxu0 0.0
  %70 = vmatprep.subr.mxu0 0.0
  %71 = vmatpush2.msra.mxu0 0.0
  %72 = vmatprep.subr.mxu0 0.0
  %73 = vmatpush2.msra.mxu0 0.0
  %74 = vmatprep.subr.mxu0 0.0
  %75 = vmatpush2.msra.mxu0 0.0
  %76 = vmatprep.subr.mxu0 0.0
  %77 = vmatpush2.msra.mxu0 0.0
  %78 = vmatprep.subr.mxu0 0.0
  %79 = vmatpush2.msra.mxu0 0.0
  %80 = vmatprep.subr.mxu0 0.0
  %81 = vmatpush2.msra.mxu0 0.0
  %82 = vmatprep.subr.mxu0 0.0
  %83 = vmatpush2.msra.mxu0 0.0
  %84 = vmatprep.subr.mxu0 0.0
  %85 = vmatpush2.msra.mxu0 0.0
  %86 = vmatprep.subr.mxu0 0.0
  %87 = vmatpush2.msra.mxu0 0.0
  %88 = vmatprep.subr.mxu0 0.0
  %89 = vmatpush2.msra.mxu0 0.0
  %90 = vmatprep.subr.mxu0 0.0
  %91 = vmatpush2.msra.mxu0 0.0
  %92 = vmatprep.mubr.f32.mxu0 0.0
  %93 = vmatmul.mubr.f32.gmra.mxu0 %v26
  %v94 = vpop.f32.mrf.mxu0
  %v95 = vadd.f32 0.0, %v94
  %v96 = vpop.f32.mrf.mxu0
  %97 = vdwg.mxu0
  %v99 = vrot.slane %v95, 1
  %v102 = vadd.f32 %v22, %v95
  %v103 = vadd.f32 %v23, %v99
  %v104 = vtanh.pop %v102
  %v105 = vtanh.pop %v103
  %vm106 = vcmask 253952
  %107 = vst.msk [vmem:[%s2] sm:$0x1] %vm106, %v104
  %108 = vst.msk [vmem:[%s2 + $0x8] sm:$0x1] %vm106, %v105
  %v109 = vld [vmem:[%s0 + $0x1] sm:$0x1]
  %v110 = vld [vmem:[%s0 + $0x9] sm:$0x1]
  %v113 = vrot.slane %v105, 7
  %vm114 = vcmask 1041409
  %v115 = vsel %vm114, %v113, %v104
  %v116 = vsel %vm24, %v115, 0
  %118 = vmatprep.subr.mxu0 0.0
  %119 = vmatpush1.msra.mxu0 0.0
  %120 = vmatprep.subr.mxu0 0.0
  %121 = vmatpush1.msra.mxu0 0.0
  %122 = vmatprep.subr.mxu0 0.0
  %123 = vmatpush1.msra.mxu0 0.0
  %124 = vmatprep.subr.mxu0 0.0
  %125 = vmatpush1.msra.mxu0 0.0
  %126 = vmatprep.subr.mxu0 0.0
  %127 = vmatpush1.msra.mxu0 0.0
  %128 = vmatprep.subr.mxu0 0.0
  %129 = vmatpush1.msra.mxu0 0.0
  %130 = vmatprep.subr.mxu0 0.0
  %131 = vmatpush1.msra.mxu0 0.0
  %132 = vmatprep.subr.mxu0 0.0
  %133 = vmatpush1.msra.mxu0 0.0
  %134 = vmatprep.subr.mxu0 0.0
  %135 = vmatpush1.msra.mxu0 0.0
  %136 = vmatprep.subr.mxu0 0.0
  %137 = vmatpush1.msra.mxu0 0.0
  %138 = vmatprep.subr.mxu0 0.0
  %139 = vmatpush1.msra.mxu0 0.0
  %140 = vmatprep.subr.mxu0 0.0
  %141 = vmatpush1.msra.mxu0 0.0
  %142 = vmatprep.subr.mxu0 0.0
  %143 = vmatpush1.msra.mxu0 %v20
  %144 = vmatprep.subr.mxu0 0.0
  %145 = vmatpush1.msra.mxu0 %v19
  %146 = vmatprep.subr.mxu0 0.0
  %147 = vmatpush1.msra.mxu0 %v18
  %148 = vmatprep.subr.mxu0 0.0
  %149 = vmatpush1.msra.mxu0 %v17
  %150 = vmatprep.subr.mxu0 0.0
  %151 = vmatpush2.msra.mxu0 0.0
  %152 = vmatprep.subr.mxu0 0.0
  %153 = vmatpush2.msra.mxu0 0.0
  %154 = vmatprep.subr.mxu0 0.0
  %155 = vmatpush2.msra.mxu0 0.0
  %156 = vmatprep.subr.mxu0 0.0
  %157 = vmatpush2.msra.mxu0 0.0
  %158 = vmatprep.subr.mxu0 0.0
  %159 = vmatpush2.msra.mxu0 0.0
  %160 = vmatprep.subr.mxu0 0.0
  %161 = vmatpush2.msra.mxu0 0.0
  %162 = vmatprep.subr.mxu0 0.0
  %163 = vmatpush2.msra.mxu0 0.0
  %164 = vmatprep.subr.mxu0 0.0
  %165 = vmatpush2.msra.mxu0 0.0
  %166 = vmatprep.subr.mxu0 0.0
  %167 = vmatpush2.msra.mxu0 0.0
  %168 = vmatprep.subr.mxu0 0.0
  %169 = vmatpush2.msra.mxu0 0.0
  %170 = vmatprep.subr.mxu0 0.0
  %171 = vmatpush2.msra.mxu0 0.0
  %172 = vmatprep.subr.mxu0 0.0
  %173 = vmatpush2.msra.mxu0 0.0
  %174 = vmatprep.subr.mxu0 0.0
  %175 = vmatpush2.msra.mxu0 0.0
  %176 = vmatprep.subr.mxu0 0.0
  %177 = vmatpush2.msra.mxu0 0.0
  %178 = vmatprep.subr.mxu0 0.0
  %179 = vmatpush2.msra.mxu0 0.0
  %180 = vmatprep.subr.mxu0 0.0
  %181 = vmatpush2.msra.mxu0 0.0
  %182 = vmatprep.mubr.f32.mxu0 0.0
  %183 = vmatmul.mubr.f32.gmra.mxu0 %v116
  %v184 = vpop.f32.mrf.mxu0
  %v185 = vadd.f32 0.0, %v184
  %v186 = vpop.f32.mrf.mxu0
  %187 = vdwg.mxu0
  %v189 = vrot.slane %v185, 1
  %v192 = vadd.f32 %v109, %v185
  %v193 = vadd.f32 %v110, %v189
  %v194 = vtanh.pop %v192
  %v195 = vtanh.pop %v193
  %196 = vst.msk [vmem:[%s2 + $0x1] sm:$0x1] %vm106, %v194
  %197 = vst.msk [vmem:[%s2 + $0x9] sm:$0x1] %vm106, %v195
  %v198 = vld [vmem:[%s0 + $0x2] sm:$0x1]
  %v199 = vld [vmem:[%s0 + $0xa] sm:$0x1]
  %v202 = vrot.slane %v195, 7
  %v203 = vsel %vm114, %v202, %v194
  %v204 = vsel %vm24, %v203, 0
  %206 = vmatprep.subr.mxu0 0.0
  %207 = vmatpush1.msra.mxu0 0.0
  %208 = vmatprep.subr.mxu0 0.0
  %209 = vmatpush1.msra.mxu0 0.0
  %210 = vmatprep.subr.mxu0 0.0
  %211 = vmatpush1.msra.mxu0 0.0
  %212 = vmatprep.subr.mxu0 0.0
  %213 = vmatpush1.msra.mxu0 0.0
  %214 = vmatprep.subr.mxu0 0.0
  %215 = vmatpush1.msra.mxu0 0.0
  %216 = vmatprep.subr.mxu0 0.0
  %217 = vmatpush1.msra.mxu0 0.0
  %218 = vmatprep.subr.mxu0 0.0
  %219 = vmatpush1.msra.mxu0 0.0
  %220 = vmatprep.subr.mxu0 0.0
  %221 = vmatpush1.msra.mxu0 0.0
  %222 = vmatprep.subr.mxu0 0.0
  %223 = vmatpush1.msra.mxu0 0.0
  %224 = vmatprep.subr.mxu0 0.0
  %225 = vmatpush1.msra.mxu0 0.0
  %226 = vmatprep.subr.mxu0 0.0
  %227 = vmatpush1.msra.mxu0 0.0
  %228 = vmatprep.subr.mxu0 0.0
  %229 = vmatpush1.msra.mxu0 0.0
  %230 = vmatprep.subr.mxu0 0.0
  %231 = vmatpush1.msra.mxu0 %v20
  %232 = vmatprep.subr.mxu0 0.0
  %233 = vmatpush1.msra.mxu0 %v19
  %234 = vmatprep.subr.mxu0 0.0
  %235 = vmatpush1.msra.mxu0 %v18
  %236 = vmatprep.subr.mxu0 0.0
  %237 = vmatpush1.msra.mxu0 %v17
  %238 = vmatprep.subr.mxu0 0.0
  %239 = vmatpush2.msra.mxu0 0.0
  %240 = vmatprep.subr.mxu0 0.0
  %241 = vmatpush2.msra.mxu0 0.0
  %242 = vmatprep.subr.mxu0 0.0
  %243 = vmatpush2.msra.mxu0 0.0
  %244 = vmatprep.subr.mxu0 0.0
  %245 = vmatpush2.msra.mxu0 0.0
  %246 = vmatprep.subr.mxu0 0.0
  %247 = vmatpush2.msra.mxu0 0.0
  %248 = vmatprep.subr.mxu0 0.0
  %249 = vmatpush2.msra.mxu0 0.0
  %250 = vmatprep.subr.mxu0 0.0
  %251 = vmatpush2.msra.mxu0 0.0
  %252 = vmatprep.subr.mxu0 0.0
  %253 = vmatpush2.msra.mxu0 0.0
  %254 = vmatprep.subr.mxu0 0.0
  %255 = vmatpush2.msra.mxu0 0.0
  %256 = vmatprep.subr.mxu0 0.0
  %257 = vmatpush2.msra.mxu0 0.0
  %258 = vmatprep.subr.mxu0 0.0
  %259 = vmatpush2.msra.mxu0 0.0
  %260 = vmatprep.subr.mxu0 0.0
  %261 = vmatpush2.msra.mxu0 0.0
  %262 = vmatprep.subr.mxu0 0.0
  %263 = vmatpush2.msra.mxu0 0.0
  %264 = vmatprep.subr.mxu0 0.0
  %265 = vmatpush2.msra.mxu0 0.0
  %266 = vmatprep.subr.mxu0 0.0
  %267 = vmatpush2.msra.mxu0 0.0
  %268 = vmatprep.subr.mxu0 0.0
  %269 = vmatpush2.msra.mxu0 0.0
  %270 = vmatprep.mubr.f32.mxu0 0.0
  %271 = vmatmul.mubr.f32.gmra.mxu0 %v204
  %v272 = vpop.f32.mrf.mxu0
  %v273 = vadd.f32 0.0, %v272
  %v274 = vpop.f32.mrf.mxu0
  %275 = vdwg.mxu0
  %v277 = vrot.slane %v273, 1
  %v280 = vadd.f32 %v198, %v273
  %v281 = vadd.f32 %v199, %v277
  %v282 = vtanh.pop %v280
  %v283 = vtanh.pop %v281
  %284 = vst.msk [vmem:[%s2 + $0x2] sm:$0x1] %vm106, %v282
  %285 = vst.msk [vmem:[%s2 + $0xa] sm:$0x1] %vm106, %v283
  %v286 = vld [vmem:[%s0 + $0x3] sm:$0x1]
  %v287 = vld [vmem:[%s0 + $0xb] sm:$0x1]
  %v290 = vrot.slane %v283, 7
  %v291 = vsel %vm114, %v290, %v282
  %v292 = vsel %vm24, %v291, 0
  %294 = vmatprep.subr.mxu0 0.0
  %295 = vmatpush1.msra.mxu0 0.0
  %296 = vmatprep.subr.mxu0 0.0
  %297 = vmatpush1.msra.mxu0 0.0
  %298 = vmatprep.subr.mxu0 0.0
  %299 = vmatpush1.msra.mxu0 0.0
  %300 = vmatprep.subr.mxu0 0.0
  %301 = vmatpush1.msra.mxu0 0.0
  %302 = vmatprep.subr.mxu0 0.0
  %303 = vmatpush1.msra.mxu0 0.0
  %304 = vmatprep.subr.mxu0 0.0
  %305 = vmatpush1.msra.mxu0 0.0
  %306 = vmatprep.subr.mxu0 0.0
  %307 = vmatpush1.msra.mxu0 0.0
  %308 = vmatprep.subr.mxu0 0.0
  %309 = vmatpush1.msra.mxu0 0.0
  %310 = vmatprep.subr.mxu0 0.0
  %311 = vmatpush1.msra.mxu0 0.0
  %312 = vmatprep.subr.mxu0 0.0
  %313 = vmatpush1.msra.mxu0 0.0
  %314 = vmatprep.subr.mxu0 0.0
  %315 = vmatpush1.msra.mxu0 0.0
  %316 = vmatprep.subr.mxu0 0.0
  %317 = vmatpush1.msra.mxu0 0.0
  %318 = vmatprep.subr.mxu0 0.0
  %319 = vmatpush1.msra.mxu0 %v20
  %320 = vmatprep.subr.mxu0 0.0
  %321 = vmatpush1.msra.mxu0 %v19
  %322 = vmatprep.subr.mxu0 0.0
  %323 = vmatpush1.msra.mxu0 %v18
  %324 = vmatprep.subr.mxu0 0.0
  %325 = vmatpush1.msra.mxu0 %v17
  %326 = vmatprep.subr.mxu0 0.0
  %327 = vmatpush2.msra.mxu0 0.0
  %328 = vmatprep.subr.mxu0 0.0
  %329 = vmatpush2.msra.mxu0 0.0
  %330 = vmatprep.subr.mxu0 0.0
  %331 = vmatpush2.msra.mxu0 0.0
  %332 = vmatprep.subr.mxu0 0.0
  %333 = vmatpush2.msra.mxu0 0.0
  %334 = vmatprep.subr.mxu0 0.0
  %335 = vmatpush2.msra.mxu0 0.0
  %336 = vmatprep.subr.mxu0 0.0
  %337 = vmatpush2.msra.mxu0 0.0
  %338 = vmatprep.subr.mxu0 0.0
  %339 = vmatpush2.msra.mxu0 0.0
  %340 = vmatprep.subr.mxu0 0.0
  %341 = vmatpush2.msra.mxu0 0.0
  %342 = vmatprep.subr.mxu0 0.0
  %343 = vmatpush2.msra.mxu0 0.0
  %344 = vmatprep.subr.mxu0 0.0
  %345 = vmatpush2.msra.mxu0 0.0
  %346 = vmatprep.subr.mxu0 0.0
  %347 = vmatpush2.msra.mxu0 0.0
  %348 = vmatprep.subr.mxu0 0.0
  %349 = vmatpush2.msra.mxu0 0.0
  %350 = vmatprep.subr.mxu0 0.0
  %351 = vmatpush2.msra.mxu0 0.0
  %352 = vmatprep.subr.mxu0 0.0
  %353 = vmatpush2.msra.mxu0 0.0
  %354 = vmatprep.subr.mxu0 0.0
  %355 = vmatpush2.msra.mxu0 0.0
  %356 = vmatprep.subr.mxu0 0.0
  %357 = vmatpush2.msra.mxu0 0.0
  %358 = vmatprep.mubr.f32.mxu0 0.0
  %359 = vmatmul.mubr.f32.gmra.mxu0 %v292
  %v360 = vpop.f32.mrf.mxu0
  %v361 = vadd.f32 0.0, %v360
  %v362 = vpop.f32.mrf.mxu0
  %363 = vdwg.mxu0
  %v365 = vrot.slane %v361, 1
  %v368 = vadd.f32 %v286, %v361
  %v369 = vadd.f32 %v287, %v365
  %v370 = vtanh.pop %v368
  %v371 = vtanh.pop %v369
  %372 = vst.msk [vmem:[%s2 + $0x3] sm:$0x1] %vm106, %v370
  %373 = vst.msk [vmem:[%s2 + $0xb] sm:$0x1] %vm106, %v371
  %v374 = vld [vmem:[%s0 + $0x4] sm:$0x1]
  %v375 = vld [vmem:[%s0 + $0xc] sm:$0x1]
  %v378 = vrot.slane %v371, 7
  %v379 = vsel %vm114, %v378, %v370
  %v380 = vsel %vm24, %v379, 0
  %382 = vmatprep.subr.mxu0 0.0
  %383 = vmatpush1.msra.mxu0 0.0
  %384 = vmatprep.subr.mxu0 0.0
  %385 = vmatpush1.msra.mxu0 0.0
  %386 = vmatprep.subr.mxu0 0.0
  %387 = vmatpush1.msra.mxu0 0.0
  %388 = vmatprep.subr.mxu0 0.0
  %389 = vmatpush1.msra.mxu0 0.0
  %390 = vmatprep.subr.mxu0 0.0
  %391 = vmatpush1.msra.mxu0 0.0
  %392 = vmatprep.subr.mxu0 0.0
  %393 = vmatpush1.msra.mxu0 0.0
  %394 = vmatprep.subr.mxu0 0.0
  %395 = vmatpush1.msra.mxu0 0.0
  %396 = vmatprep.subr.mxu0 0.0
  %397 = vmatpush1.msra.mxu0 0.0
  %398 = vmatprep.subr.mxu0 0.0
  %399 = vmatpush1.msra.mxu0 0.0
  %400 = vmatprep.subr.mxu0 0.0
  %401 = vmatpush1.msra.mxu0 0.0
  %402 = vmatprep.subr.mxu0 0.0
  %403 = vmatpush1.msra.mxu0 0.0
  %404 = vmatprep.subr.mxu0 0.0
  %405 = vmatpush1.msra.mxu0 0.0
  %406 = vmatprep.subr.mxu0 0.0
  %407 = vmatpush1.msra.mxu0 %v20
  %408 = vmatprep.subr.mxu0 0.0
  %409 = vmatpush1.msra.mxu0 %v19
  %410 = vmatprep.subr.mxu0 0.0
  %411 = vmatpush1.msra.mxu0 %v18
  %412 = vmatprep.subr.mxu0 0.0
  %413 = vmatpush1.msra.mxu0 %v17
  %414 = vmatprep.subr.mxu0 0.0
  %415 = vmatpush2.msra.mxu0 0.0
  %416 = vmatprep.subr.mxu0 0.0
  %417 = vmatpush2.msra.mxu0 0.0
  %418 = vmatprep.subr.mxu0 0.0
  %419 = vmatpush2.msra.mxu0 0.0
  %420 = vmatprep.subr.mxu0 0.0
  %421 = vmatpush2.msra.mxu0 0.0
  %422 = vmatprep.subr.mxu0 0.0
  %423 = vmatpush2.msra.mxu0 0.0
  %424 = vmatprep.subr.mxu0 0.0
  %425 = vmatpush2.msra.mxu0 0.0
  %426 = vmatprep.subr.mxu0 0.0
  %427 = vmatpush2.msra.mxu0 0.0
  %428 = vmatprep.subr.mxu0 0.0
  %429 = vmatpush2.msra.mxu0 0.0
  %430 = vmatprep.subr.mxu0 0.0
  %431 = vmatpush2.msra.mxu0 0.0
  %432 = vmatprep.subr.mxu0 0.0
  %433 = vmatpush2.msra.mxu0 0.0
  %434 = vmatprep.subr.mxu0 0.0
  %435 = vmatpush2.msra.mxu0 0.0
  %436 = vmatprep.subr.mxu0 0.0
  %437 = vmatpush2.msra.mxu0 0.0
  %438 = vmatprep.subr.mxu0 0.0
  %439 = vmatpush2.msra.mxu0 0.0
  %440 = vmatprep.subr.mxu0 0.0
  %441 = vmatpush2.msra.mxu0 0.0
  %442 = vmatprep.subr.mxu0 0.0
  %443 = vmatpush2.msra.mxu0 0.0
  %444 = vmatprep.subr.mxu0 0.0
  %445 = vmatpush2.msra.mxu0 0.0
  %446 = vmatprep.mubr.f32.mxu0 0.0
  %447 = vmatmul.mubr.f32.gmra.mxu0 %v380
  %v448 = vpop.f32.mrf.mxu0
  %v449 = vadd.f32 0.0, %v448
  %v450 = vpop.f32.mrf.mxu0
  %451 = vdwg.mxu0
  %v453 = vrot.slane %v449, 1
  %v456 = vadd.f32 %v374, %v449
  %v457 = vadd.f32 %v375, %v453
  %v458 = vtanh.pop %v456
  %v459 = vtanh.pop %v457
  %460 = vst.msk [vmem:[%s2 + $0x4] sm:$0x1] %vm106, %v458
  %461 = vst.msk [vmem:[%s2 + $0xc] sm:$0x1] %vm106, %v459
  %v462 = vld [vmem:[%s0 + $0x5] sm:$0x1]
  %v463 = vld [vmem:[%s0 + $0xd] sm:$0x1]
  %v466 = vrot.slane %v459, 7
  %v467 = vsel %vm114, %v466, %v458
  %v468 = vsel %vm24, %v467, 0
  %470 = vmatprep.subr.mxu0 0.0
  %471 = vmatpush1.msra.mxu0 0.0
  %472 = vmatprep.subr.mxu0 0.0
  %473 = vmatpush1.msra.mxu0 0.0
  %474 = vmatprep.subr.mxu0 0.0
  %475 = vmatpush1.msra.mxu0 0.0
  %476 = vmatprep.subr.mxu0 0.0
  %477 = vmatpush1.msra.mxu0 0.0
  %478 = vmatprep.subr.mxu0 0.0
  %479 = vmatpush1.msra.mxu0 0.0
  %480 = vmatprep.subr.mxu0 0.0
  %481 = vmatpush1.msra.mxu0 0.0
  %482 = vmatprep.subr.mxu0 0.0
  %483 = vmatpush1.msra.mxu0 0.0
  %484 = vmatprep.subr.mxu0 0.0
  %485 = vmatpush1.msra.mxu0 0.0
  %486 = vmatprep.subr.mxu0 0.0
  %487 = vmatpush1.msra.mxu0 0.0
  %488 = vmatprep.subr.mxu0 0.0
  %489 = vmatpush1.msra.mxu0 0.0
  %490 = vmatprep.subr.mxu0 0.0
  %491 = vmatpush1.msra.mxu0 0.0
  %492 = vmatprep.subr.mxu0 0.0
  %493 = vmatpush1.msra.mxu0 0.0
  %494 = vmatprep.subr.mxu0 0.0
  %495 = vmatpush1.msra.mxu0 %v20
  %496 = vmatprep.subr.mxu0 0.0
  %497 = vmatpush1.msra.mxu0 %v19
  %498 = vmatprep.subr.mxu0 0.0
  %499 = vmatpush1.msra.mxu0 %v18
  %500 = vmatprep.subr.mxu0 0.0
  %501 = vmatpush1.msra.mxu0 %v17
  %502 = vmatprep.subr.mxu0 0.0
  %503 = vmatpush2.msra.mxu0 0.0
  %504 = vmatprep.subr.mxu0 0.0
  %505 = vmatpush2.msra.mxu0 0.0
  %506 = vmatprep.subr.mxu0 0.0
  %507 = vmatpush2.msra.mxu0 0.0
  %508 = vmatprep.subr.mxu0 0.0
  %509 = vmatpush2.msra.mxu0 0.0
  %510 = vmatprep.subr.mxu0 0.0
  %511 = vmatpush2.msra.mxu0 0.0
  %512 = vmatprep.subr.mxu0 0.0
  %513 = vmatpush2.msra.mxu0 0.0
  %514 = vmatprep.subr.mxu0 0.0
  %515 = vmatpush2.msra.mxu0 0.0
  %516 = vmatprep.subr.mxu0 0.0
  %517 = vmatpush2.msra.mxu0 0.0
  %518 = vmatprep.subr.mxu0 0.0
  %519 = vmatpush2.msra.mxu0 0.0
  %520 = vmatprep.subr.mxu0 0.0
  %521 = vmatpush2.msra.mxu0 0.0
  %522 = vmatprep.subr.mxu0 0.0
  %523 = vmatpush2.msra.mxu0 0.0
  %524 = vmatprep.subr.mxu0 0.0
  %525 = vmatpush2.msra.mxu0 0.0
  %526 = vmatprep.subr.mxu0 0.0
  %527 = vmatpush2.msra.mxu0 0.0
  %528 = vmatprep.subr.mxu0 0.0
  %529 = vmatpush2.msra.mxu0 0.0
  %530 = vmatprep.subr.mxu0 0.0
  %531 = vmatpush2.msra.mxu0 0.0
  %532 = vmatprep.subr.mxu0 0.0
  %533 = vmatpush2.msra.mxu0 0.0
  %534 = vmatprep.mubr.f32.mxu0 0.0
  %535 = vmatmul.mubr.f32.gmra.mxu0 %v468
  %v536 = vpop.f32.mrf.mxu0
  %v537 = vadd.f32 0.0, %v536
  %v538 = vpop.f32.mrf.mxu0
  %539 = vdwg.mxu0
  %v541 = vrot.slane %v537, 1
  %v544 = vadd.f32 %v462, %v537
  %v545 = vadd.f32 %v463, %v541
  %v546 = vtanh.pop %v544
  %v547 = vtanh.pop %v545
  %548 = vst.msk [vmem:[%s2 + $0x5] sm:$0x1] %vm106, %v546
  %549 = vst.msk [vmem:[%s2 + $0xd] sm:$0x1] %vm106, %v547
  %v550 = vld [vmem:[%s0 + $0x6] sm:$0x1]
  %v551 = vld [vmem:[%s0 + $0xe] sm:$0x1]
  %v554 = vrot.slane %v547, 7
  %v555 = vsel %vm114, %v554, %v546
  %v556 = vsel %vm24, %v555, 0
  %558 = vmatprep.subr.mxu0 0.0
  %559 = vmatpush1.msra.mxu0 0.0
  %560 = vmatprep.subr.mxu0 0.0
  %561 = vmatpush1.msra.mxu0 0.0
  %562 = vmatprep.subr.mxu0 0.0
  %563 = vmatpush1.msra.mxu0 0.0
  %564 = vmatprep.subr.mxu0 0.0
  %565 = vmatpush1.msra.mxu0 0.0
  %566 = vmatprep.subr.mxu0 0.0
  %567 = vmatpush1.msra.mxu0 0.0
  %568 = vmatprep.subr.mxu0 0.0
  %569 = vmatpush1.msra.mxu0 0.0
  %570 = vmatprep.subr.mxu0 0.0
  %571 = vmatpush1.msra.mxu0 0.0
  %572 = vmatprep.subr.mxu0 0.0
  %573 = vmatpush1.msra.mxu0 0.0
  %574 = vmatprep.subr.mxu0 0.0
  %575 = vmatpush1.msra.mxu0 0.0
  %576 = vmatprep.subr.mxu0 0.0
  %577 = vmatpush1.msra.mxu0 0.0
  %578 = vmatprep.subr.mxu0 0.0
  %579 = vmatpush1.msra.mxu0 0.0
  %580 = vmatprep.subr.mxu0 0.0
  %581 = vmatpush1.msra.mxu0 0.0
  %582 = vmatprep.subr.mxu0 0.0
  %583 = vmatpush1.msra.mxu0 %v20
  %584 = vmatprep.subr.mxu0 0.0
  %585 = vmatpush1.msra.mxu0 %v19
  %586 = vmatprep.subr.mxu0 0.0
  %587 = vmatpush1.msra.mxu0 %v18
  %588 = vmatprep.subr.mxu0 0.0
  %589 = vmatpush1.msra.mxu0 %v17
  %590 = vmatprep.subr.mxu0 0.0
  %591 = vmatpush2.msra.mxu0 0.0
  %592 = vmatprep.subr.mxu0 0.0
  %593 = vmatpush2.msra.mxu0 0.0
  %594 = vmatprep.subr.mxu0 0.0
  %595 = vmatpush2.msra.mxu0 0.0
  %596 = vmatprep.subr.mxu0 0.0
  %597 = vmatpush2.msra.mxu0 0.0
  %598 = vmatprep.subr.mxu0 0.0
  %599 = vmatpush2.msra.mxu0 0.0
  %600 = vmatprep.subr.mxu0 0.0
  %601 = vmatpush2.msra.mxu0 0.0
  %602 = vmatprep.subr.mxu0 0.0
  %603 = vmatpush2.msra.mxu0 0.0
  %604 = vmatprep.subr.mxu0 0.0
  %605 = vmatpush2.msra.mxu0 0.0
  %606 = vmatprep.subr.mxu0 0.0
  %607 = vmatpush2.msra.mxu0 0.0
  %608 = vmatprep.subr.mxu0 0.0
  %609 = vmatpush2.msra.mxu0 0.0
  %610 = vmatprep.subr.mxu0 0.0
  %611 = vmatpush2.msra.mxu0 0.0
  %612 = vmatprep.subr.mxu0 0.0
  %613 = vmatpush2.msra.mxu0 0.0
  %614 = vmatprep.subr.mxu0 0.0
  %615 = vmatpush2.msra.mxu0 0.0
  %616 = vmatprep.subr.mxu0 0.0
  %617 = vmatpush2.msra.mxu0 0.0
  %618 = vmatprep.subr.mxu0 0.0
  %619 = vmatpush2.msra.mxu0 0.0
  %620 = vmatprep.subr.mxu0 0.0
  %621 = vmatpush2.msra.mxu0 0.0
  %622 = vmatprep.mubr.f32.mxu0 0.0
  %623 = vmatmul.mubr.f32.gmra.mxu0 %v556
  %v624 = vpop.f32.mrf.mxu0
  %v625 = vadd.f32 0.0, %v624
  %v626 = vpop.f32.mrf.mxu0
  %627 = vdwg.mxu0
  %v629 = vrot.slane %v625, 1
  %v632 = vadd.f32 %v550, %v625
  %v633 = vadd.f32 %v551, %v629
  %v634 = vtanh.pop %v632
  %v635 = vtanh.pop %v633
  %636 = vst.msk [vmem:[%s2 + $0x6] sm:$0x1] %vm106, %v634
  %637 = vst.msk [vmem:[%s2 + $0xe] sm:$0x1] %vm106, %v635
  %v638 = vld [vmem:[%s0 + $0x7] sm:$0x1]
  %v639 = vld [vmem:[%s0 + $0xf] sm:$0x1]
  %v642 = vrot.slane %v635, 7
  %v643 = vsel %vm114, %v642, %v634
  %v644 = vsel %vm24, %v643, 0
  %646 = vmatprep.subr.mxu0 0.0
  %647 = vmatpush1.msra.mxu0 0.0
  %648 = vmatprep.subr.mxu0 0.0
  %649 = vmatpush1.msra.mxu0 0.0
  %650 = vmatprep.subr.mxu0 0.0
  %651 = vmatpush1.msra.mxu0 0.0
  %652 = vmatprep.subr.mxu0 0.0
  %653 = vmatpush1.msra.mxu0 0.0
  %654 = vmatprep.subr.mxu0 0.0
  %655 = vmatpush1.msra.mxu0 0.0
  %656 = vmatprep.subr.mxu0 0.0
  %657 = vmatpush1.msra.mxu0 0.0
  %658 = vmatprep.subr.mxu0 0.0
  %659 = vmatpush1.msra.mxu0 0.0
  %660 = vmatprep.subr.mxu0 0.0
  %661 = vmatpush1.msra.mxu0 0.0
  %662 = vmatprep.subr.mxu0 0.0
  %663 = vmatpush1.msra.mxu0 0.0
  %664 = vmatprep.subr.mxu0 0.0
  %665 = vmatpush1.msra.mxu0 0.0
  %666 = vmatprep.subr.mxu0 0.0
  %667 = vmatpush1.msra.mxu0 0.0
  %668 = vmatprep.subr.mxu0 0.0
  %669 = vmatpush1.msra.mxu0 0.0
  %670 = vmatprep.subr.mxu0 0.0
  %671 = vmatpush1.msra.mxu0 %v20
  %672 = vmatprep.subr.mxu0 0.0
  %673 = vmatpush1.msra.mxu0 %v19
  %674 = vmatprep.subr.mxu0 0.0
  %675 = vmatpush1.msra.mxu0 %v18
  %676 = vmatprep.subr.mxu0 0.0
  %677 = vmatpush1.msra.mxu0 %v17
  %678 = vmatprep.subr.mxu0 0.0
  %679 = vmatpush2.msra.mxu0 0.0
  %680 = vmatprep.subr.mxu0 0.0
  %681 = vmatpush2.msra.mxu0 0.0
  %682 = vmatprep.subr.mxu0 0.0
  %683 = vmatpush2.msra.mxu0 0.0
  %684 = vmatprep.subr.mxu0 0.0
  %685 = vmatpush2.msra.mxu0 0.0
  %686 = vmatprep.subr.mxu0 0.0
  %687 = vmatpush2.msra.mxu0 0.0
  %688 = vmatprep.subr.mxu0 0.0
  %689 = vmatpush2.msra.mxu0 0.0
  %690 = vmatprep.subr.mxu0 0.0
  %691 = vmatpush2.msra.mxu0 0.0
  %692 = vmatprep.subr.mxu0 0.0
  %693 = vmatpush2.msra.mxu0 0.0
  %694 = vmatprep.subr.mxu0 0.0
  %695 = vmatpush2.msra.mxu0 0.0
  %696 = vmatprep.subr.mxu0 0.0
  %697 = vmatpush2.msra.mxu0 0.0
  %698 = vmatprep.subr.mxu0 0.0
  %699 = vmatpush2.msra.mxu0 0.0
  %700 = vmatprep.subr.mxu0 0.0
  %701 = vmatpush2.msra.mxu0 0.0
  %702 = vmatprep.subr.mxu0 0.0
  %703 = vmatpush2.msra.mxu0 0.0
  %704 = vmatprep.subr.mxu0 0.0
  %705 = vmatpush2.msra.mxu0 0.0
  %706 = vmatprep.subr.mxu0 0.0
  %707 = vmatpush2.msra.mxu0 0.0
  %708 = vmatprep.subr.mxu0 0.0
  %709 = vmatpush2.msra.mxu0 0.0
  %710 = vmatprep.mubr.f32.mxu0 0.0
  %711 = vmatmul.mubr.f32.gmra.mxu0 %v644
  %v712 = vpop.f32.mrf.mxu0
  %v713 = vadd.f32 0.0, %v712
  %v714 = vpop.f32.mrf.mxu0
  %715 = vdwg.mxu0
  %v717 = vrot.slane %v713, 1
  %v720 = vadd.f32 %v638, %v713
  %v721 = vadd.f32 %v639, %v717
  %v722 = vtanh.pop %v720
  %v723 = vtanh.pop %v721
  %724 = vst.msk [vmem:[%s2 + $0x7] sm:$0x1] %vm106, %v722
  %725 = vst.msk [vmem:[%s2 + $0xf] sm:$0x1] %vm106, %v723
  %v728 = vrot.slane %v723, 7
  %v729 = vsel %vm114, %v728, %v722
  %vm731 = vcmask 254976
  %732 = vst.msk [vmem:[#allocation2] sm:$0x3] %vm731, %v729
  // Predicated region
  $region14: #{lm_rnn_forward.1} parent=0 // pred_check
    _
  $region15: #{lm_rnn_forward.1} parent=0 // pred_check_branch
    %734 = sbr.rel (0) target = $region17
  $region16: #{lm_rnn_forward.1} parent=0 // pred_region
    _
  $region17: #{lm_rnn_forward.1} parent=0 // pred_fallthru
    _
  // Predicated region
  $region18: #{lm_rnn_forward.1} parent=0 // pred_check
    _
  $region19: #{lm_rnn_forward.1} parent=0 // pred_check_branch
    %736 = sbr.rel (0) target = $region21
  $region20: #{lm_rnn_forward.1} parent=0 // pred_region
    _
  $region21: #{lm_rnn_forward.1} parent=0 // pred_fallthru
    _

</llo_original>
